<compile_context>
chip_gen: v6e
topology: v6e:2x2x1
jax: 0.10.0
libtpu: 0.0.40
codegen_flags: <defaults>
</compile_context>

<pallas_src>
import functools

import jax
import jax.numpy as jnp
from jax.experimental import pallas as pl
from jax.experimental.pallas import tpu as pltpu


_BLOCK_BYTES = 2 << 20   # per-block cap: 3 streams x 2 buffers x 2 MiB = 12 MiB
_MAX_LANES = 2048        # lane-dense, but leaves room for multiple grid blocks


def _plan_tiles(size, itemsize):
    """Lane-dense 2-D factorization of a flat element count.

    Returns (rows, lanes, tile_m, tile_l).  Noise injection is i.i.d.
    elementwise, so physical layout is irrelevant: pick the widest
    multiple-of-128 lane width (unmasked stores) and tile rows in
    multiples of 8.  Grids use cdiv, so non-dividing tiles are still legal.
    """
    # Widest multiple-of-128 divisor of `size`, capped at _MAX_LANES.
    lanes = 0
    c = 128
    while c <= min(size, _MAX_LANES):
        if size % c == 0:
            lanes = c
        c += 128
    if lanes == 0:
        # No multiple-of-128 factor (tiny / awkward size): one full block.
        return 1, size, 1, size
    rows = size // lanes

    # Row tile: multiple of 8; prefer >= 2 row blocks when rows >= 16 (v7x
    # megacore sharding of the parallel axis).
    if rows < 8:
        tile_m = rows
    else:
        limit = rows // 2 if rows >= 16 else rows
        tile_m = 8
        for cand in (1024, 512, 256, 128, 64, 32, 16, 8):
            if cand <= limit and rows % cand == 0:
                tile_m = cand
                break
    grid_m = -(-rows // tile_m)

    # Lane tile: largest multiple-of-128 divisor of `lanes` within the
    # per-block VMEM budget; if there is only a single row block, split the
    # lane axis so the second parallel grid axis still has >= 2 blocks.
    lane_cap = lanes if (grid_m >= 2 or lanes < 256) else lanes // 2
    tile_l = 128
    for cand in range(lanes, 0, -128):
        if (lanes % cand == 0 and cand <= lane_cap
                and tile_m * cand * itemsize <= _BLOCK_BYTES):
            tile_l = cand
            break
    return rows, lanes, tile_m, tile_l


def _add_noise_kernel(x_ref, n_ref, o_ref, *, magnitude):
    # magnitude is a Python float -> weak-typed, so the arithmetic stays in
    # x's dtype (bf16-native on v6e/v7x, f32 otherwise).
    o_ref[...] = (x_ref[...] + magnitude * n_ref[...]).astype(o_ref.dtype)


def noise_layer_forward(x, *, magnitude=0.0, loss_type="lsgan", key=None):
    """Pallas implementation of NoiseLayer.forward.

    x         : float array (PGGAN uses NCHW), any rank.
    magnitude : the module's `self.magnitude` (Python number; default 0).
    loss_type : module config; anything other than 'lsgan' is a pure identity.
    key       : jax PRNG key for the Gaussian noise (replaces torch's global
                RNG; pass a fresh key per step to match torch behaviour).
    """
    if loss_type != "lsgan":
        return x                                   # host-side config branch

    magnitude = float(magnitude)
    if magnitude == 0.0:
        # x + 0 * randn == x exactly (module default): skip the kernel and the
        # full HBM read/write round trip it would cost.
        return x

    if key is None:
        key = jax.random.PRNGKey(0)
    # TODO(synk): generate the noise on-chip (pltpu.prng_random_bits /
    # pltpu.stateful_normal) to drop this extra HBM stream once those
    # primitives lower in the target jax build's interpret path; for now the
    # noise is produced by XLA and streamed through the kernel.
    noise = jax.random.normal(key, x.shape, dtype=x.dtype)

    size = x.size
    itemsize = x.dtype.itemsize
    rows, lanes, tile_m, tile_l = _plan_tiles(size, itemsize)
    grid = (pl.cdiv(rows, tile_m), pl.cdiv(lanes, tile_l))

    # Contiguous view reshape: zero data movement, lane-dense last axis.
    x2d = x.reshape(rows, lanes)
    n2d = noise.reshape(rows, lanes)

    spec = pl.BlockSpec((tile_m, tile_l), lambda i, j: (i, j))

    out2d = pl.pallas_call(
        functools.partial(_add_noise_kernel, magnitude=magnitude),
        out_shape=jax.ShapeDtypeStruct((rows, lanes), x.dtype),
        grid=grid,
        in_specs=[spec, spec],
        out_specs=spec,
        compiler_params=pltpu.CompilerParams(
            dimension_semantics=("parallel", "parallel"),
            vmem_limit_bytes=32 << 20,
        ),
        cost_estimate=pl.CostEstimate(
            flops=2 * size,
            transcendentals=0,
            bytes_accessed=3 * size * itemsize,
        ),
        # TODO(synk): input_output_aliases={0: 0} would make the add in-place
        # over x's HBM buffer when the caller donates x.
    )(x2d, n2d)

    return out2d.reshape(x.shape)


if __name__ == "__main__":
    key = jax.random.PRNGKey(0)
    x = jax.random.normal(key, (2, 4, 16, 16), dtype=jnp.float32)   # NCHW

    # (a) loss_type != 'lsgan' -> identity (host-side branch, no kernel).
    out_other = noise_layer_forward(x, magnitude=0.0, loss_type="wgan")
    assert jnp.array_equal(out_other, x)

    # (b) lsgan with the module's default magnitude=0 -> exact identity,
    #     kernel skipped entirely.
    out0 = noise_layer_forward(x, magnitude=0.0, loss_type="lsgan")
    jax.block_until_ready(out0)
    assert out0.shape == x.shape
    assert jnp.array_equal(out0, x)

    # (c) lsgan with nonzero magnitude -> x + magnitude * N(0, 1) noise.
    mag = 0.1
    nkey = jax.random.PRNGKey(1234)
    out1 = noise_layer_forward(x, magnitude=mag, loss_type="lsgan", key=nkey)
    jax.block_until_ready(out1)
    assert out1.shape == x.shape

    expected = x + mag * jax.random.normal(nkey, x.shape, dtype=x.dtype)
    assert jnp.allclose(out1, expected, atol=1e-6, rtol=1e-6)

    noise_est = (out1 - x) / mag
    assert bool(jnp.any(noise_est != 0.0))
    assert abs(float(jnp.mean(noise_est))) < 0.2
    assert abs(float(jnp.std(noise_est)) - 1.0) < 0.2

    print("KERNEL_OK")
</pallas_src>

<mosaic_0001>
module attributes {stable_mosaic.version = 11 : i64} {
  func.func @_add_noise_kernel(%arg0: i32, %arg1: i32, %arg2: memref<1x1024xf32, #tpu.memory_space<vmem>>, %arg3: memref<1x1024xf32, #tpu.memory_space<vmem>>, %arg4: memref<1x1024xf32, #tpu.memory_space<vmem>>) attributes {dimension_semantics = [#tpu.dimension_semantics<parallel>, #tpu.dimension_semantics<parallel>], iteration_bounds = array<i64: 1, 2>, scalar_prefetch = 0 : i64, scratch_operands = 0 : i64, tpu.core_type = #tpu.core_type<tc>, window_params = [{transform_indices = @transform_0, window_bounds = array<i64: 1, 1024>}, {transform_indices = @transform_1, window_bounds = array<i64: 1, 1024>}, {transform_indices = @transform_2, window_bounds = array<i64: 1, 1024>}]} {
    %c0 = arith.constant 0 : index
    %c0_0 = arith.constant 0 : index
    %0 = vector.load %arg2[%c0, %c0_0] : memref<1x1024xf32, #tpu.memory_space<vmem>>, vector<1x1024xf32>
    %c0_1 = arith.constant 0 : index
    %c0_2 = arith.constant 0 : index
    %1 = vector.load %arg3[%c0_1, %c0_2] : memref<1x1024xf32, #tpu.memory_space<vmem>>, vector<1x1024xf32>
    %cst = arith.constant 1.000000e-01 : f32
    %2 = vector.broadcast %cst : f32 to vector<1x1024xf32>
    %3 = arith.mulf %2, %1 : vector<1x1024xf32>
    %4 = arith.addf %0, %3 : vector<1x1024xf32>
    %c0_3 = arith.constant 0 : index
    %c0_4 = arith.constant 0 : index
    %5 = vector.load %arg4[%c0_3, %c0_4] : memref<1x1024xf32, #tpu.memory_space<vmem>>, vector<1x1024xf32>
    tpu.vector_store %arg4[%c0_3, %c0_4], %4 {strides = array<i32>} : memref<1x1024xf32, #tpu.memory_space<vmem>>, vector<1x1024xf32>,
    return
  }
  func.func @transform_0(%arg0: i32, %arg1: i32) -> (i32, i32) {
    %c0_i32 = arith.constant 0 : i32
    return %arg0, %arg1 : i32, i32
  }
  func.func @transform_1(%arg0: i32, %arg1: i32) -> (i32, i32) {
    %c0_i32 = arith.constant 0 : i32
    return %arg0, %arg1 : i32, i32
  }
  func.func @transform_2(%arg0: i32, %arg1: i32) -> (i32, i32) {
    %c0_i32 = arith.constant 0 : i32
    return %arg0, %arg1 : i32, i32
  }
}

</mosaic_0001>

<llo_original>
// kernel: tpu_custom_call.1
$region0: #{tpu_custom_call.1}
  #allocation0 [shape = 'u32[]', space=smem, size = 0x4, offset = 0x4, fixed_abs, tag = 'smem constant byte address 0x4 - core index']
  #allocation1 [shape = 'u32[144,128]{1,0:T(1,128)}', space=vmem, size = 0x12000, scoped, tag = 'internal scratch']
  %s0 = inlined_call_operand.hbm [shape: f32[1,2048], index: 0, kind: input, shape index: {}]
  %s1 = inlined_call_operand.hbm [shape: f32[1,2048], index: 1, kind: input, shape index: {}]
  %s2 = inlined_call_operand.hbm [shape: f32[1,2048], index: 2, kind: output, shape index: {}]
  %s3 = sld [smem:[#allocation0]]
  $region49: #{tpu_custom_call.1} parent=0
    _
  %s5 = ssub.s32 1, %s3
  %s6 = scalar_select 0, %s5, %s3
  $region1: #{tpu_custom_call.1} parent=0
    #allocation2 [shape = 'u8[8192]{0}', space=vmem, size = 0x2000, scoped, tag = 'input window, operand 0']
    #allocation3 [shape = 's32[2]{0}', space=sflag, size = 0x8, scoped, tag = 'scoped memory for tpu_custom_call.1']
    #allocation4 [shape = 's32[2]{0}', space=sflag, size = 0x8, scoped, tag = 'scoped memory for tpu_custom_call.1']
    #allocation5 [shape = 'u8[8192]{0}', space=vmem, size = 0x2000, scoped, tag = 'input window, operand 1']
    #allocation6 [shape = 's32[2]{0}', space=sflag, size = 0x8, scoped, tag = 'scoped memory for tpu_custom_call.1']
    #allocation7 [shape = 'u8[8192]{0}', space=vmem, size = 0x2000, scoped, tag = 'output window, operand 0']
    %7 = vsyncpa [#allocation3], 0
    %s8 = scalar_lea.sflag [#allocation3], 1
    %9 = vsyncpa %s8, 0
    %10 = vsyncpa [#allocation6], 0
    %s11 = scalar_lea.sflag [#allocation6], 1
    %12 = vsyncpa %s11, 0
    %13 = vsyncpa [#allocation4], 0
    %s14 = scalar_lea.sflag [#allocation4], 1
    %15 = vsyncpa %s14, 0
    loop: start=0, step=1, limit=4
    $region2: #{tpu_custom_call.1} parent=1 // loop_pre_header
      _
    $region3: #{tpu_custom_call.1} parent=1 // loop_header
      %s17 = sphi 0, %s21
      %p18 = scmp.ge.s32.totalorder %s17, 4
      %s24 = sphi 0, %s36
      %s25 = sphi 0, %s32
      %s26 = sphi 0, %s24
      %s27 = sphi 0, %s25
      %s28 = sphi 0, %s26
      %s29 = sphi 0, %s27
      %s41 = sphi 0, %s43
      %s44 = sphi 0, %s41
      %s45 = sphi 0, %s44
      %s61 = sphi 0, %s45
      %s69 = sphi 0, %s71
      %s72 = sphi 0, %s69
      %s73 = sphi 0, %s72
      %s89 = sphi 0, %s73
      %s97 = sphi 0, %s99
      %s100 = sphi 0, %s97
      %s101 = sphi 0, %s100
      %s117 = sphi 0, %s101
    $region4: #{tpu_custom_call.1} parent=1 // loop_header_branch
      %20 = sbr.rel (%p18) target = $region8
    $region5: #{tpu_custom_call.1} parent=1 // loop_body
      %s22 = ssub.s32 %s17, 1
      %s23 = ssub.s32 %s17, 2
      %s30 = sadd.s32 1, %s25
      %p31 = scmp.ge.s32.totalorder %s30, 2
      %s32 = scalar_select %p31, 0, %s30
      %s33 = sadd.s32 1, %s24
      %s34 = scalar_select %p31, %s33, %s24
      %p35 = scmp.ge.s32.totalorder %s34, 1
      %s36 = scalar_select %p35, 0, %s34
      %s37 = ssub.s32 %s24, %s36
      %s38 = ssub.s32 %s25, %s32
      %s39 = sor.u32 %s37, %s38
      %p40 = scmp.eq.s32.totalorder %s39, 0
      %s42 = sadd.s32 %s41, 1
      %s43 = scalar_select %p40, %s41, %s42
      %p46 = pneg %p40
      %p47 = scmp.eq.s32.totalorder %s17, 1
      %p48 = por %p46, %p47
      %p49 = scmp.ne.s32.totalorder %s41, %s44
      %p50 = scmp.eq.s32.totalorder %s17, 0
      %p51 = por %p49, %p50
      %p52 = scmp.ne.s32.totalorder %s41, %s44
      %p53 = scmp.eq.s32.totalorder %s22, 1
      %p54 = por %p52, %p53
      %p55 = scmp.ne.s32.totalorder %s44, %s45
      %p56 = scmp.eq.s32.totalorder %s22, 0
      %p57 = por %p55, %p56
      %p58 = scmp.ne.s32.totalorder %s44, %s45
      %p59 = scmp.eq.s32.totalorder %s23, 1
      %p60 = por %p58, %p59
      %p62 = scmp.ne.s32.totalorder %s45, %s61
      %p63 = scmp.eq.s32.totalorder %s23, 0
      %p64 = por %p62, %p63
      %s65 = ssub.s32 %s24, %s36
      %s66 = ssub.s32 %s25, %s32
      %s67 = sor.u32 %s65, %s66
      %p68 = scmp.eq.s32.totalorder %s67, 0
      %s70 = sadd.s32 %s69, 1
      %s71 = scalar_select %p68, %s69, %s70
      %p74 = pneg %p68
      %p75 = scmp.eq.s32.totalorder %s17, 1
      %p76 = por %p74, %p75
      %p77 = scmp.ne.s32.totalorder %s69, %s72
      %p78 = scmp.eq.s32.totalorder %s17, 0
      %p79 = por %p77, %p78
      %p80 = scmp.ne.s32.totalorder %s69, %s72
      %p81 = scmp.eq.s32.totalorder %s22, 1
      %p82 = por %p80, %p81
      %p83 = scmp.ne.s32.totalorder %s72, %s73
      %p84 = scmp.eq.s32.totalorder %s22, 0
      %p85 = por %p83, %p84
      %p86 = scmp.ne.s32.totalorder %s72, %s73
      %p87 = scmp.eq.s32.totalorder %s23, 1
      %p88 = por %p86, %p87
      %p90 = scmp.ne.s32.totalorder %s73, %s89
      %p91 = scmp.eq.s32.totalorder %s23, 0
      %p92 = por %p90, %p91
      %s93 = ssub.s32 %s24, %s36
      %s94 = ssub.s32 %s25, %s32
      %s95 = sor.u32 %s93, %s94
      %p96 = scmp.eq.s32.totalorder %s95, 0
      %s98 = sadd.s32 %s97, 1
      %s99 = scalar_select %p96, %s97, %s98
      %p102 = pneg %p96
      %p103 = scmp.eq.s32.totalorder %s17, 1
      %p104 = por %p102, %p103
      %p105 = scmp.ne.s32.totalorder %s97, %s100
      %p106 = scmp.eq.s32.totalorder %s17, 0
      %p107 = por %p105, %p106
      %p108 = scmp.ne.s32.totalorder %s97, %s100
      %p109 = scmp.eq.s32.totalorder %s22, 1
      %p110 = por %p108, %p109
      %p111 = scmp.ne.s32.totalorder %s100, %s101
      %p112 = scmp.eq.s32.totalorder %s22, 0
      %p113 = por %p111, %p112
      %p114 = scmp.ne.s32.totalorder %s100, %s101
      %p115 = scmp.eq.s32.totalorder %s23, 1
      %p116 = por %p114, %p115
      %p118 = scmp.ne.s32.totalorder %s101, %s117
      %p119 = scmp.eq.s32.totalorder %s23, 0
      %p120 = por %p118, %p119
      %p121 = scmp.le.s32.totalorder 1, %s17
      %p122 = scmp.lt.s32.totalorder %s17, 3
      %p123 = pnand %p121, %p122
      %p124 = pneg %p123
      // Predicated region
      $region9: #{tpu_custom_call.1} parent=5 // pred_check
        _
      $region10: #{tpu_custom_call.1} parent=5 // pred_check_branch
        %126 = sbr.rel (%p123) target = $region12
      $region11: #{tpu_custom_call.1} parent=5 // pred_region
        %s127 = ssub.s32 %s17, 1
      $region12: #{tpu_custom_call.1} parent=5 // pred_fallthru
        _
      %p128 = scmp.lt.s32.totalorder %s17, 2
      // Predicated region
      $region13: #{tpu_custom_call.1} parent=5 // pred_check
        %p129 = pneg %p128
      $region14: #{tpu_custom_call.1} parent=5 // pred_check_branch
        %131 = sbr.rel (%p129) target = $region16
      $region15: #{tpu_custom_call.1} parent=5 // pred_region
        // Predicated region
        $region17: #{tpu_custom_call.1} parent=15 // pred_check
          %p132 = pneg %p51
        $region18: #{tpu_custom_call.1} parent=15 // pred_check_branch
          %134 = sbr.rel (%p132) target = $region20
        $region19: #{tpu_custom_call.1} parent=15 // pred_region
          %s135 = sand.u32 %s41, 1
          %s136 = scalar_lea.sflag [#allocation3], %s135
          %s137 = sand.u32 %s41, 1
          %s138 = smul.addr %s137, 8
          %s139 = scalar_lea.vmem [#allocation2], %s138
          %s140 = smul.u32 8, %s25
          %s142 = ssub.s32 128, 128
          %143 = vsyncadd %s136, %s142
          %s144 = smul.addr %s24, 16
          %s145 = sadd.s32 %s140, %s144
          %s146 = smul.addr %s145, 16
          %s147 = scalar_lea.hbm %s0, %s146
          %s149 = sshll.u32 %s139, 4
          %s150 = int_to_ptr.vmem [resolvable:$true] %s149
          %152 = dma.hbm_to_vmem [thread:$0]  %s147, 128, %s150, %s136
        $region20: #{tpu_custom_call.1} parent=15 // pred_fallthru
          _
        // Predicated region
        $region21: #{tpu_custom_call.1} parent=15 // pred_check
          %p153 = pneg %p79
        $region22: #{tpu_custom_call.1} parent=15 // pred_check_branch
          %155 = sbr.rel (%p153) target = $region24
        $region23: #{tpu_custom_call.1} parent=15 // pred_region
          %s156 = sand.u32 %s69, 1
          %s157 = scalar_lea.sflag [#allocation6], %s156
          %s158 = sand.u32 %s69, 1
          %s159 = smul.addr %s158, 8
          %s160 = scalar_lea.vmem [#allocation5], %s159
          %s161 = smul.u32 8, %s25
          %s163 = ssub.s32 128, 128
          %164 = vsyncadd %s157, %s163
          %s165 = smul.addr %s24, 16
          %s166 = sadd.s32 %s161, %s165
          %s167 = smul.addr %s166, 16
          %s168 = scalar_lea.hbm %s1, %s167
          %s170 = sshll.u32 %s160, 4
          %s171 = int_to_ptr.vmem [resolvable:$true] %s170
          %173 = dma.hbm_to_vmem [thread:$0]  %s168, 128, %s171, %s157
        $region24: #{tpu_custom_call.1} parent=15 // pred_fallthru
          _
      $region16: #{tpu_custom_call.1} parent=5 // pred_fallthru
        _
      %p174 = scmp.le.s32.totalorder 1, %s17
      %p175 = scmp.lt.s32.totalorder %s17, 3
      %p176 = pnand %p174, %p175
      %p177 = pneg %p176
      // Predicated region
      $region25: #{tpu_custom_call.1} parent=5 // pred_check
        _
      $region26: #{tpu_custom_call.1} parent=5 // pred_check_branch
        %179 = sbr.rel (%p176) target = $region28
      $region27: #{tpu_custom_call.1} parent=5 // pred_region
        %s180 = ssub.s32 %s17, 1
        %s181 = sand.u32 %s44, 1
        %s182 = scalar_lea.sflag [#allocation3], %s181
        %s183 = sand.u32 %s44, 1
        %s184 = smul.addr %s183, 8
        %s185 = scalar_lea.vmem [#allocation2], %s184
        // Predicated region
        $region29: #{tpu_custom_call.1} parent=27 // pred_check
          %p186 = pneg %p57
        $region30: #{tpu_custom_call.1} parent=27 // pred_check_branch
          %188 = sbr.rel (%p186) target = $region32
        $region31: #{tpu_custom_call.1} parent=27 // pred_region
          %189 = dma.done %s182, 128
        $region32: #{tpu_custom_call.1} parent=27 // pred_fallthru
          _
        %s190 = sand.u32 %s72, 1
        %s191 = scalar_lea.sflag [#allocation6], %s190
        %s192 = sand.u32 %s72, 1
        %s193 = smul.addr %s192, 8
        %s194 = scalar_lea.vmem [#allocation5], %s193
        // Predicated region
        $region33: #{tpu_custom_call.1} parent=27 // pred_check
          %p195 = pneg %p85
        $region34: #{tpu_custom_call.1} parent=27 // pred_check_branch
          %197 = sbr.rel (%p195) target = $region36
        $region35: #{tpu_custom_call.1} parent=27 // pred_region
          %198 = dma.done %s191, 128
        $region36: #{tpu_custom_call.1} parent=27 // pred_fallthru
          _
        %s199 = sand.u32 %s44, 1
        %s200 = scalar_lea.sflag [#allocation3], %s199
        %s201 = sand.u32 %s44, 1
        %s202 = smul.addr %s201, 8
        %s203 = scalar_lea.vmem [#allocation2], %s202
        %p204 = pneg %p57
        %p205 = pneg %p54
        %s206 = sand.u32 %s72, 1
        %s207 = scalar_lea.sflag [#allocation6], %s206
        %s208 = sand.u32 %s72, 1
        %s209 = smul.addr %s208, 8
        %s210 = scalar_lea.vmem [#allocation5], %s209
        %p211 = pneg %p85
        %p212 = pneg %p82
        %p213 = pneg %p113
        %p214 = pneg %p110
        %s215 = sand.u32 %s100, 1
        %s216 = scalar_lea.sflag [#allocation4], %s215
        %s217 = sand.u32 %s100, 1
        %s218 = smul.addr %s217, 8
        %s219 = scalar_lea.vmem [#allocation7], %s218
        %s220 = smul.u32 8, %s27
        %s221 = smul.u32 8, %s27
        %s222 = smul.u32 8, %s27
        %v223 = vld [vmem:[%s185] sm:$0xff]
        %v224 = vld [vmem:[%s194] sm:$0xff]
        %v225 = vmul.f32 %v224, 0.1
        %v226 = vadd.f32 %v223, %v225
        %227 = vst [vmem:[%s219] sm:$0xff] %v226
        %s228 = sand.u32 %s100, 1
        %s229 = scalar_lea.sflag [#allocation4], %s228
        %s230 = sand.u32 %s100, 1
        %s231 = smul.addr %s230, 8
        %s232 = scalar_lea.vmem [#allocation7], %s231
        // Predicated region
        $region37: #{tpu_custom_call.1} parent=27 // pred_check
          %p233 = pneg %p110
        $region38: #{tpu_custom_call.1} parent=27 // pred_check_branch
          %235 = sbr.rel (%p233) target = $region40
        $region39: #{tpu_custom_call.1} parent=27 // pred_region
          %s236 = smul.u32 8, %s27
          %s238 = ssub.s32 128, 128
          %239 = vsyncadd %s229, %s238
          %s240 = smul.addr %s26, 16
          %s241 = sadd.s32 %s236, %s240
          %s242 = smul.addr %s241, 16
          %s243 = scalar_lea.hbm %s2, %s242
          %s245 = sshll.u32 %s232, 4
          %s246 = int_to_ptr.vmem [resolvable:$true] %s245
          %248 = dma.vmem_to_hbm [thread:$0]  %s246, 128, %s243, %s229
        $region40: #{tpu_custom_call.1} parent=27 // pred_fallthru
          _
      $region28: #{tpu_custom_call.1} parent=5 // pred_fallthru
        _
      %p249 = scmp.le.s32.totalorder 2, %s17
      // Predicated region
      $region41: #{tpu_custom_call.1} parent=5 // pred_check
        %p250 = pneg %p249
      $region42: #{tpu_custom_call.1} parent=5 // pred_check_branch
        %252 = sbr.rel (%p250) target = $region44
      $region43: #{tpu_custom_call.1} parent=5 // pred_region
        %s253 = ssub.s32 %s17, 2
        // Predicated region
        $region45: #{tpu_custom_call.1} parent=43 // pred_check
          %p254 = pneg %p116
        $region46: #{tpu_custom_call.1} parent=43 // pred_check_branch
          %256 = sbr.rel (%p254) target = $region48
        $region47: #{tpu_custom_call.1} parent=43 // pred_region
          %s257 = sand.u32 %s101, 1
          %s258 = scalar_lea.sflag [#allocation4], %s257
          %s259 = sand.u32 %s101, 1
          %s260 = smul.addr %s259, 8
          %s261 = scalar_lea.vmem [#allocation7], %s260
          %262 = dma.done %s258, 128
        $region48: #{tpu_custom_call.1} parent=43 // pred_fallthru
          _
      $region44: #{tpu_custom_call.1} parent=5 // pred_fallthru
        _
    $region6: #{tpu_custom_call.1} parent=1 // loop_footer
      %s21 = sadd.s32 1, %s17
    $region7: #{tpu_custom_call.1} parent=1 // loop_footer_branch
      %16 = sbr.rel target = $region3
    $region8: #{tpu_custom_call.1} parent=1 // loop_exit
      _
    %263 = vsyncpa [#allocation3], 1
    %s264 = scalar_lea.sflag [#allocation3], 1
    %265 = vsyncpa %s264, 1
    %266 = vsyncpa [#allocation6], 1
    %s267 = scalar_lea.sflag [#allocation6], 1
    %268 = vsyncpa %s267, 1
    %269 = vsyncpa [#allocation4], 1
    %s270 = scalar_lea.sflag [#allocation4], 1
    %271 = vsyncpa %s270, 1

</llo_original>
